<compile_context>
chip_gen: v5e
topology: v5e:2x2
jax: 0.10.0
libtpu: 0.0.40
codegen_flags: <defaults>
</compile_context>

<pallas_src>
import numpy as np
import jax
import jax.numpy as jnp
from jax.experimental import pallas as pl
from jax.experimental.pallas import tpu as pltpu


def gauss_kernel(size, sigma, in_channels, out_channels):
    """(out_ch, in_ch, size, size) tiled 2-D Gaussian — matches the PyTorch module."""
    ax = np.arange(size, dtype=np.float64) - (size - 1) / 2.0
    xx, yy = np.meshgrid(ax, ax)
    k = np.exp(-(xx ** 2 + yy ** 2) / (2.0 * sigma ** 2))
    k = k / k.sum()
    k = np.tile(k[None, None, :, :], (out_channels, in_channels, 1, 1))
    return k.astype(np.float32)


def gauss_taps_1d(size, sigma):
    """Normalized 1-D taps g; outer(g, g) equals the normalized 2-D Gaussian (exact in f64)."""
    ax = np.arange(size, dtype=np.float64) - (size - 1) / 2.0
    g = np.exp(-(ax ** 2) / (2.0 * sigma ** 2))
    return g / g.sum()


def _make_blur_kernel(N, C, H, W, Ho, Wo, ksize, stride, pad, g1d):
    g = [float(v) for v in g1d]  # compile-time scalar immediates
    # Fast roll/mask path covers the module defaults (3x3, stride 1, pad 1).
    fast = (ksize == 3 and pad == 1 and stride == 1 and H >= 2 and W >= 2)

    def blur_fast(s, masks):
        is_r0, is_rl, is_c0, is_cl = masks
        # ---- vertical 3-tap with reflection (sublane rolls on the XLU) -------
        sd = pltpu.roll(s, 1, axis=0)        # row r <- s[r-1]  (wraps at r=0)
        su = pltpu.roll(s, H - 1, axis=0)    # row r <- s[r+1]  (wraps at r=H-1)
        above = jnp.where(is_r0, su, sd)     # reflect: padded row -1 == row 1
        below = jnp.where(is_rl, sd, su)     # reflect: padded row H  == row H-2
        v = g[0] * above + g[1] * s + g[2] * below
        # ---- horizontal 3-tap with reflection (lane rolls on the XLU) --------
        vl = pltpu.roll(v, 1, axis=1)        # col c <- v[c-1]  (wraps at c=0)
        vr = pltpu.roll(v, W - 1, axis=1)    # col c <- v[c+1]  (wraps at c=W-1)
        left = jnp.where(is_c0, vr, vl)      # reflect: padded col -1 == col 1
        right = jnp.where(is_cl, vl, vr)     # reflect: padded col W  == col W-2
        return g[0] * left + g[1] * v + g[2] * right

    def blur_general(s):
        # Fallback for arbitrary size/stride/pad: still separable (2k taps),
        # but uses an explicitly reflection-padded plane.  Correct, not tuned.
        if pad > 0:
            top = [s[pad - r:pad - r + 1, :] for r in range(pad)]
            bot = [s[H - 2 - r:H - 1 - r, :] for r in range(pad)]
            sp = jnp.concatenate(top + [s] + bot, axis=0)            # (H+2p, W)
        else:
            sp = s
        v = jnp.zeros((Ho, W), jnp.float32)
        for i in range(ksize):
            v = v + g[i] * jax.lax.slice(
                sp, (i, 0), (i + (Ho - 1) * stride + 1, W), (stride, 1))
        if pad > 0:
            left = [v[:, pad - r:pad - r + 1] for r in range(pad)]
            right = [v[:, W - 2 - r:W - 1 - r] for r in range(pad)]
            vp = jnp.concatenate(left + [v] + right, axis=1)         # (Ho, W+2p)
        else:
            vp = v
        o = jnp.zeros((Ho, Wo), jnp.float32)
        for j in range(ksize):
            o = o + g[j] * jax.lax.slice(
                vp, (0, j), (Ho, j + (Wo - 1) * stride + 1), (1, stride))
        return o

    def kernel(x_ref, o_ref):
        # x_ref: (N, C, H, W)   o_ref: (N, C, Ho, Wo)   — single block, single step.
        if fast:
            row = jax.lax.broadcasted_iota(jnp.int32, (H, W), 0)
            col = jax.lax.broadcasted_iota(jnp.int32, (H, W), 1)
            masks = (row == 0, row == H - 1, col == 0, col == W - 1)  # hoisted

        for n in range(N):
            # Channel sum in f32 (dense conv with identical taps for every
            # (out_ch, in_ch) pair  =>  out[o] = blur(sum_c x[c]) for every o).
            s = x_ref[n, 0, :, :].astype(jnp.float32)
            for c in range(1, C):
                s = s + x_ref[n, c, :, :].astype(jnp.float32)

            acc = blur_fast(s, masks) if fast else blur_general(s)
            plane = acc.astype(o_ref.dtype)

            # Per-channel stores (no broadcast_to value -> no C-wide vreg pressure).
            for c in range(C):
                o_ref[n, c, :, :] = plane

    return kernel


def gaussian_blur(x, size=3, sigma=1.0, stride=1, pad=1):
    """x: (N, C, H, W) float32.  Matches GaussianBlurLayer.forward (dense conv, groups=1)."""
    N, C, H, W = x.shape
    assert pad < H and pad < W, "reflection pad must be smaller than the spatial dims"
    Hp, Wp = H + 2 * pad, W + 2 * pad
    Ho = (Hp - size) // stride + 1
    Wo = (Wp - size) // stride + 1

    g1d = gauss_taps_1d(size, sigma)
    kernel_fn = _make_blur_kernel(N, C, H, W, Ho, Wo, size, stride, pad, g1d)

    return pl.pallas_call(
        kernel_fn,
        out_shape=jax.ShapeDtypeStruct((N, C, Ho, Wo), x.dtype),
        grid=(1,),  # single block: whole problem is ~8 KiB, one DMA in / one out
        in_specs=[pl.BlockSpec((N, C, H, W), lambda i: (0, 0, 0, 0))],
        out_specs=pl.BlockSpec((N, C, Ho, Wo), lambda i: (0, 0, 0, 0)),
    )(x)


def _reference(x, size, sigma, stride, pad):
    """Pure-JAX reference: F.conv2d on the reflection-padded input with the tiled weight."""
    xp = jnp.pad(x, ((0, 0), (0, 0), (pad, pad), (pad, pad)), mode="reflect")
    w = jnp.asarray(gauss_kernel(size, sigma, x.shape[1], x.shape[1]))
    return jax.lax.conv_general_dilated(
        xp, w, window_strides=(stride, stride), padding="VALID",
        dimension_numbers=("NCHW", "OIHW", "NCHW"),
        precision=jax.lax.Precision.HIGHEST,
    )


if __name__ == "__main__":
    key = jax.random.PRNGKey(0)
    N, C, H, W = 2, 4, 16, 16
    size, sigma, stride, pad = 3, 1.0, 1, 1

    x = jax.random.normal(key, (N, C, H, W), dtype=jnp.float32)

    out = gaussian_blur(x, size=size, sigma=sigma, stride=stride, pad=pad)
    out = jax.block_until_ready(out)

    ref = _reference(x, size, sigma, stride, pad)
    assert out.shape == ref.shape, (out.shape, ref.shape)
    np.testing.assert_allclose(np.asarray(out), np.asarray(ref),
                               rtol=1e-5, atol=1e-5)
    print("KERNEL_OK")
</pallas_src>

<mosaic_0001>
module attributes {stable_mosaic.version = 11 : i64} {
  func.func @kernel(%arg0: i32, %arg1: memref<2x4x16x16xf32, #tpu.memory_space<vmem>>, %arg2: memref<2x4x16x16xf32, #tpu.memory_space<vmem>>) attributes {dimension_semantics = [#tpu.dimension_semantics<arbitrary>], iteration_bounds = array<i64: 1>, scalar_prefetch = 0 : i64, scratch_operands = 0 : i64, tpu.core_type = #tpu.core_type<tc>, window_params = [{pipeline_mode = #tpu.pipeline_mode<synchronous>, transform_indices = @transform_0, window_bounds = array<i64: 2, 4, 16, 16>}, {pipeline_mode = #tpu.pipeline_mode<synchronous>, transform_indices = @transform_1, window_bounds = array<i64: 2, 4, 16, 16>}]} {
    %0 = tpu.iota {dimensions = array<i32: 0>} : vector<16x16xi32>
    %1 = tpu.iota {dimensions = array<i32: 1>} : vector<16x16xi32>
    %c0_i32 = arith.constant 0 : i32
    %2 = vector.broadcast %c0_i32 : i32 to vector<16x16xi32>
    %3 = arith.cmpi eq, %0, %2 : vector<16x16xi32>
    %c15_i32 = arith.constant 15 : i32
    %4 = vector.broadcast %c15_i32 : i32 to vector<16x16xi32>
    %5 = arith.cmpi eq, %0, %4 : vector<16x16xi32>
    %c0_i32_0 = arith.constant 0 : i32
    %6 = vector.broadcast %c0_i32_0 : i32 to vector<16x16xi32>
    %7 = arith.cmpi eq, %1, %6 : vector<16x16xi32>
    %c15_i32_1 = arith.constant 15 : i32
    %8 = vector.broadcast %c15_i32_1 : i32 to vector<16x16xi32>
    %9 = arith.cmpi eq, %1, %8 : vector<16x16xi32>
    %c0 = arith.constant 0 : index
    %c0_2 = arith.constant 0 : index
    %c0_3 = arith.constant 0 : index
    %c0_4 = arith.constant 0 : index
    %10 = vector.load %arg1[%c0, %c0_2, %c0_3, %c0_4] : memref<2x4x16x16xf32, #tpu.memory_space<vmem>>, vector<1x1x16x16xf32>
    %11 = vector.shape_cast %10 : vector<1x1x16x16xf32> to vector<16x16xf32>
    %c0_5 = arith.constant 0 : index
    %c1 = arith.constant 1 : index
    %c0_6 = arith.constant 0 : index
    %c0_7 = arith.constant 0 : index
    %12 = vector.load %arg1[%c0_5, %c1, %c0_6, %c0_7] : memref<2x4x16x16xf32, #tpu.memory_space<vmem>>, vector<1x1x16x16xf32>
    %13 = vector.shape_cast %12 : vector<1x1x16x16xf32> to vector<16x16xf32>
    %14 = arith.addf %11, %13 : vector<16x16xf32>
    %c0_8 = arith.constant 0 : index
    %c2 = arith.constant 2 : index
    %c0_9 = arith.constant 0 : index
    %c0_10 = arith.constant 0 : index
    %15 = vector.load %arg1[%c0_8, %c2, %c0_9, %c0_10] : memref<2x4x16x16xf32, #tpu.memory_space<vmem>>, vector<1x1x16x16xf32>
    %16 = vector.shape_cast %15 : vector<1x1x16x16xf32> to vector<16x16xf32>
    %17 = arith.addf %14, %16 : vector<16x16xf32>
    %c0_11 = arith.constant 0 : index
    %c3 = arith.constant 3 : index
    %c0_12 = arith.constant 0 : index
    %c0_13 = arith.constant 0 : index
    %18 = vector.load %arg1[%c0_11, %c3, %c0_12, %c0_13] : memref<2x4x16x16xf32, #tpu.memory_space<vmem>>, vector<1x1x16x16xf32>
    %19 = vector.shape_cast %18 : vector<1x1x16x16xf32> to vector<16x16xf32>
    %20 = arith.addf %17, %19 : vector<16x16xf32>
    %c1_i32 = arith.constant 1 : i32
    %21 = tpu.dynamic_rotate %20 by %c1_i32 dim 0 : vector<16x16xf32>, i32 -> vector<16x16xf32>
    %c15_i32_14 = arith.constant 15 : i32
    %22 = tpu.dynamic_rotate %20 by %c15_i32_14 dim 0 : vector<16x16xf32>, i32 -> vector<16x16xf32>
    %23 = arith.select %3, %22, %21 : vector<16x16xi1>, vector<16x16xf32>
    %24 = arith.select %5, %21, %22 : vector<16x16xi1>, vector<16x16xf32>
    %cst = arith.constant 0.274068624 : f32
    %25 = vector.broadcast %cst : f32 to vector<16x16xf32>
    %26 = arith.mulf %25, %23 : vector<16x16xf32>
    %cst_15 = arith.constant 0.451862752 : f32
    %27 = vector.broadcast %cst_15 : f32 to vector<16x16xf32>
    %28 = arith.mulf %27, %20 : vector<16x16xf32>
    %29 = arith.addf %26, %28 : vector<16x16xf32>
    %cst_16 = arith.constant 0.274068624 : f32
    %30 = vector.broadcast %cst_16 : f32 to vector<16x16xf32>
    %31 = arith.mulf %30, %24 : vector<16x16xf32>
    %32 = arith.addf %29, %31 : vector<16x16xf32>
    %c1_i32_17 = arith.constant 1 : i32
    %33 = tpu.dynamic_rotate %32 by %c1_i32_17 dim 1 : vector<16x16xf32>, i32 -> vector<16x16xf32>
    %c15_i32_18 = arith.constant 15 : i32
    %34 = tpu.dynamic_rotate %32 by %c15_i32_18 dim 1 : vector<16x16xf32>, i32 -> vector<16x16xf32>
    %35 = arith.select %7, %34, %33 : vector<16x16xi1>, vector<16x16xf32>
    %36 = arith.select %9, %33, %34 : vector<16x16xi1>, vector<16x16xf32>
    %cst_19 = arith.constant 0.274068624 : f32
    %37 = vector.broadcast %cst_19 : f32 to vector<16x16xf32>
    %38 = arith.mulf %37, %35 : vector<16x16xf32>
    %cst_20 = arith.constant 0.451862752 : f32
    %39 = vector.broadcast %cst_20 : f32 to vector<16x16xf32>
    %40 = arith.mulf %39, %32 : vector<16x16xf32>
    %41 = arith.addf %38, %40 : vector<16x16xf32>
    %cst_21 = arith.constant 0.274068624 : f32
    %42 = vector.broadcast %cst_21 : f32 to vector<16x16xf32>
    %43 = arith.mulf %42, %36 : vector<16x16xf32>
    %44 = arith.addf %41, %43 : vector<16x16xf32>
    %c0_22 = arith.constant 0 : index
    %c0_23 = arith.constant 0 : index
    %c0_24 = arith.constant 0 : index
    %c0_25 = arith.constant 0 : index
    %45 = vector.load %arg2[%c0_22, %c0_23, %c0_24, %c0_25] : memref<2x4x16x16xf32, #tpu.memory_space<vmem>>, vector<1x1x16x16xf32>
    %46 = vector.shape_cast %45 : vector<1x1x16x16xf32> to vector<16x16xf32>
    %47 = vector.shape_cast %44 : vector<16x16xf32> to vector<1x1x16x16xf32>
    tpu.vector_store %arg2[%c0_22, %c0_23, %c0_24, %c0_25], %47 {strides = array<i32>} : memref<2x4x16x16xf32, #tpu.memory_space<vmem>>, vector<1x1x16x16xf32>,
    %c0_26 = arith.constant 0 : index
    %c1_27 = arith.constant 1 : index
    %c0_28 = arith.constant 0 : index
    %c0_29 = arith.constant 0 : index
    %48 = vector.load %arg2[%c0_26, %c1_27, %c0_28, %c0_29] : memref<2x4x16x16xf32, #tpu.memory_space<vmem>>, vector<1x1x16x16xf32>
    %49 = vector.shape_cast %48 : vector<1x1x16x16xf32> to vector<16x16xf32>
    %50 = vector.shape_cast %44 : vector<16x16xf32> to vector<1x1x16x16xf32>
    tpu.vector_store %arg2[%c0_26, %c1_27, %c0_28, %c0_29], %50 {strides = array<i32>} : memref<2x4x16x16xf32, #tpu.memory_space<vmem>>, vector<1x1x16x16xf32>,
    %c0_30 = arith.constant 0 : index
    %c2_31 = arith.constant 2 : index
    %c0_32 = arith.constant 0 : index
    %c0_33 = arith.constant 0 : index
    %51 = vector.load %arg2[%c0_30, %c2_31, %c0_32, %c0_33] : memref<2x4x16x16xf32, #tpu.memory_space<vmem>>, vector<1x1x16x16xf32>
    %52 = vector.shape_cast %51 : vector<1x1x16x16xf32> to vector<16x16xf32>
    %53 = vector.shape_cast %44 : vector<16x16xf32> to vector<1x1x16x16xf32>
    tpu.vector_store %arg2[%c0_30, %c2_31, %c0_32, %c0_33], %53 {strides = array<i32>} : memref<2x4x16x16xf32, #tpu.memory_space<vmem>>, vector<1x1x16x16xf32>,
    %c0_34 = arith.constant 0 : index
    %c3_35 = arith.constant 3 : index
    %c0_36 = arith.constant 0 : index
    %c0_37 = arith.constant 0 : index
    %54 = vector.load %arg2[%c0_34, %c3_35, %c0_36, %c0_37] : memref<2x4x16x16xf32, #tpu.memory_space<vmem>>, vector<1x1x16x16xf32>
    %55 = vector.shape_cast %54 : vector<1x1x16x16xf32> to vector<16x16xf32>
    %56 = vector.shape_cast %44 : vector<16x16xf32> to vector<1x1x16x16xf32>
    tpu.vector_store %arg2[%c0_34, %c3_35, %c0_36, %c0_37], %56 {strides = array<i32>} : memref<2x4x16x16xf32, #tpu.memory_space<vmem>>, vector<1x1x16x16xf32>,
    %c1_38 = arith.constant 1 : index
    %c0_39 = arith.constant 0 : index
    %c0_40 = arith.constant 0 : index
    %c0_41 = arith.constant 0 : index
    %57 = vector.load %arg1[%c1_38, %c0_39, %c0_40, %c0_41] : memref<2x4x16x16xf32, #tpu.memory_space<vmem>>, vector<1x1x16x16xf32>
    %58 = vector.shape_cast %57 : vector<1x1x16x16xf32> to vector<16x16xf32>
    %c1_42 = arith.constant 1 : index
    %c1_43 = arith.constant 1 : index
    %c0_44 = arith.constant 0 : index
    %c0_45 = arith.constant 0 : index
    %59 = vector.load %arg1[%c1_42, %c1_43, %c0_44, %c0_45] : memref<2x4x16x16xf32, #tpu.memory_space<vmem>>, vector<1x1x16x16xf32>
    %60 = vector.shape_cast %59 : vector<1x1x16x16xf32> to vector<16x16xf32>
    %61 = arith.addf %58, %60 : vector<16x16xf32>
    %c1_46 = arith.constant 1 : index
    %c2_47 = arith.constant 2 : index
    %c0_48 = arith.constant 0 : index
    %c0_49 = arith.constant 0 : index
    %62 = vector.load %arg1[%c1_46, %c2_47, %c0_48, %c0_49] : memref<2x4x16x16xf32, #tpu.memory_space<vmem>>, vector<1x1x16x16xf32>
    %63 = vector.shape_cast %62 : vector<1x1x16x16xf32> to vector<16x16xf32>
    %64 = arith.addf %61, %63 : vector<16x16xf32>
    %c1_50 = arith.constant 1 : index
    %c3_51 = arith.constant 3 : index
    %c0_52 = arith.constant 0 : index
    %c0_53 = arith.constant 0 : index
    %65 = vector.load %arg1[%c1_50, %c3_51, %c0_52, %c0_53] : memref<2x4x16x16xf32, #tpu.memory_space<vmem>>, vector<1x1x16x16xf32>
    %66 = vector.shape_cast %65 : vector<1x1x16x16xf32> to vector<16x16xf32>
    %67 = arith.addf %64, %66 : vector<16x16xf32>
    %c1_i32_54 = arith.constant 1 : i32
    %68 = tpu.dynamic_rotate %67 by %c1_i32_54 dim 0 : vector<16x16xf32>, i32 -> vector<16x16xf32>
    %c15_i32_55 = arith.constant 15 : i32
    %69 = tpu.dynamic_rotate %67 by %c15_i32_55 dim 0 : vector<16x16xf32>, i32 -> vector<16x16xf32>
    %70 = arith.select %3, %69, %68 : vector<16x16xi1>, vector<16x16xf32>
    %71 = arith.select %5, %68, %69 : vector<16x16xi1>, vector<16x16xf32>
    %cst_56 = arith.constant 0.274068624 : f32
    %72 = vector.broadcast %cst_56 : f32 to vector<16x16xf32>
    %73 = arith.mulf %72, %70 : vector<16x16xf32>
    %cst_57 = arith.constant 0.451862752 : f32
    %74 = vector.broadcast %cst_57 : f32 to vector<16x16xf32>
    %75 = arith.mulf %74, %67 : vector<16x16xf32>
    %76 = arith.addf %73, %75 : vector<16x16xf32>
    %cst_58 = arith.constant 0.274068624 : f32
    %77 = vector.broadcast %cst_58 : f32 to vector<16x16xf32>
    %78 = arith.mulf %77, %71 : vector<16x16xf32>
    %79 = arith.addf %76, %78 : vector<16x16xf32>
    %c1_i32_59 = arith.constant 1 : i32
    %80 = tpu.dynamic_rotate %79 by %c1_i32_59 dim 1 : vector<16x16xf32>, i32 -> vector<16x16xf32>
    %c15_i32_60 = arith.constant 15 : i32
    %81 = tpu.dynamic_rotate %79 by %c15_i32_60 dim 1 : vector<16x16xf32>, i32 -> vector<16x16xf32>
    %82 = arith.select %7, %81, %80 : vector<16x16xi1>, vector<16x16xf32>
    %83 = arith.select %9, %80, %81 : vector<16x16xi1>, vector<16x16xf32>
    %cst_61 = arith.constant 0.274068624 : f32
    %84 = vector.broadcast %cst_61 : f32 to vector<16x16xf32>
    %85 = arith.mulf %84, %82 : vector<16x16xf32>
    %cst_62 = arith.constant 0.451862752 : f32
    %86 = vector.broadcast %cst_62 : f32 to vector<16x16xf32>
    %87 = arith.mulf %86, %79 : vector<16x16xf32>
    %88 = arith.addf %85, %87 : vector<16x16xf32>
    %cst_63 = arith.constant 0.274068624 : f32
    %89 = vector.broadcast %cst_63 : f32 to vector<16x16xf32>
    %90 = arith.mulf %89, %83 : vector<16x16xf32>
    %91 = arith.addf %88, %90 : vector<16x16xf32>
    %c1_64 = arith.constant 1 : index
    %c0_65 = arith.constant 0 : index
    %c0_66 = arith.constant 0 : index
    %c0_67 = arith.constant 0 : index
    %92 = vector.load %arg2[%c1_64, %c0_65, %c0_66, %c0_67] : memref<2x4x16x16xf32, #tpu.memory_space<vmem>>, vector<1x1x16x16xf32>
    %93 = vector.shape_cast %92 : vector<1x1x16x16xf32> to vector<16x16xf32>
    %94 = vector.shape_cast %91 : vector<16x16xf32> to vector<1x1x16x16xf32>
    tpu.vector_store %arg2[%c1_64, %c0_65, %c0_66, %c0_67], %94 {strides = array<i32>} : memref<2x4x16x16xf32, #tpu.memory_space<vmem>>, vector<1x1x16x16xf32>,
    %c1_68 = arith.constant 1 : index
    %c1_69 = arith.constant 1 : index
    %c0_70 = arith.constant 0 : index
    %c0_71 = arith.constant 0 : index
    %95 = vector.load %arg2[%c1_68, %c1_69, %c0_70, %c0_71] : memref<2x4x16x16xf32, #tpu.memory_space<vmem>>, vector<1x1x16x16xf32>
    %96 = vector.shape_cast %95 : vector<1x1x16x16xf32> to vector<16x16xf32>
    %97 = vector.shape_cast %91 : vector<16x16xf32> to vector<1x1x16x16xf32>
    tpu.vector_store %arg2[%c1_68, %c1_69, %c0_70, %c0_71], %97 {strides = array<i32>} : memref<2x4x16x16xf32, #tpu.memory_space<vmem>>, vector<1x1x16x16xf32>,
    %c1_72 = arith.constant 1 : index
    %c2_73 = arith.constant 2 : index
    %c0_74 = arith.constant 0 : index
    %c0_75 = arith.constant 0 : index
    %98 = vector.load %arg2[%c1_72, %c2_73, %c0_74, %c0_75] : memref<2x4x16x16xf32, #tpu.memory_space<vmem>>, vector<1x1x16x16xf32>
    %99 = vector.shape_cast %98 : vector<1x1x16x16xf32> to vector<16x16xf32>
    %100 = vector.shape_cast %91 : vector<16x16xf32> to vector<1x1x16x16xf32>
    tpu.vector_store %arg2[%c1_72, %c2_73, %c0_74, %c0_75], %100 {strides = array<i32>} : memref<2x4x16x16xf32, #tpu.memory_space<vmem>>, vector<1x1x16x16xf32>,
    %c1_76 = arith.constant 1 : index
    %c3_77 = arith.constant 3 : index
    %c0_78 = arith.constant 0 : index
    %c0_79 = arith.constant 0 : index
    %101 = vector.load %arg2[%c1_76, %c3_77, %c0_78, %c0_79] : memref<2x4x16x16xf32, #tpu.memory_space<vmem>>, vector<1x1x16x16xf32>
    %102 = vector.shape_cast %101 : vector<1x1x16x16xf32> to vector<16x16xf32>
    %103 = vector.shape_cast %91 : vector<16x16xf32> to vector<1x1x16x16xf32>
    tpu.vector_store %arg2[%c1_76, %c3_77, %c0_78, %c0_79], %103 {strides = array<i32>} : memref<2x4x16x16xf32, #tpu.memory_space<vmem>>, vector<1x1x16x16xf32>,
    return
  }
  func.func @transform_0(%arg0: i32) -> (i32, i32, i32, i32) {
    %c0_i32 = arith.constant 0 : i32
    %c0_i32_0 = arith.constant 0 : i32
    %c0_i32_1 = arith.constant 0 : i32
    %c0_i32_2 = arith.constant 0 : i32
    %c0_i32_3 = arith.constant 0 : i32
    return %c0_i32, %c0_i32_0, %c0_i32_1, %c0_i32_2 : i32, i32, i32, i32
  }
  func.func @transform_1(%arg0: i32) -> (i32, i32, i32, i32) {
    %c0_i32 = arith.constant 0 : i32
    %c0_i32_0 = arith.constant 0 : i32
    %c0_i32_1 = arith.constant 0 : i32
    %c0_i32_2 = arith.constant 0 : i32
    %c0_i32_3 = arith.constant 0 : i32
    return %c0_i32, %c0_i32_0, %c0_i32_1, %c0_i32_2 : i32, i32, i32, i32
  }
}

</mosaic_0001>

<llo_original>
// kernel: tpu_custom_call.1
$region0: #{tpu_custom_call.1}
  #allocation0 [shape = 'u32[]', space=smem, size = 0x4, offset = 0x4, fixed_abs, tag = 'smem constant byte address 0x4 - core index']
  #allocation1 [shape = 'u32[72,128]{1,0:T(1,128)}', space=vmem, size = 0x9000, scoped, tag = 'internal scratch']
  %s0 = inlined_call_operand.hbm [shape: f32[2,4,16,16], index: 0, kind: input, shape index: {}]
  %s1 = inlined_call_operand.hbm [shape: f32[2,4,16,16], index: 1, kind: output, shape index: {}]
  %s2 = sld [smem:[#allocation0]]
  $region18: #{tpu_custom_call.1} parent=0
    _
  %s4 = ssub.s32 1, %s2
  %s5 = scalar_select 0, %s4, %s2
  $region1: #{tpu_custom_call.1} parent=0
    #allocation2 [shape = 'u8[65536]{0}', space=vmem, size = 0x10000, scoped, tag = 'input window, operand 0, single buffered']
    #allocation3 [shape = 's32[1]{0}', space=sflag, size = 0x4, scoped, tag = 'scoped memory for tpu_custom_call.1']
    #allocation4 [shape = 's32[1]{0}', space=sflag, size = 0x4, scoped, tag = 'scoped memory for tpu_custom_call.1']
    #allocation5 [shape = 'u8[65536]{0}', space=vmem, size = 0x10000, scoped, tag = 'output window, operand 0, single buffered']
    %6 = vsyncpa [#allocation3], 0
    %7 = vsyncpa [#allocation4], 0
    // Predicated region
    $region2: #{tpu_custom_call.1} parent=1 // pred_check
      _
    $region3: #{tpu_custom_call.1} parent=1 // pred_check_branch
      %9 = sbr.rel (0) target = $region5
    $region4: #{tpu_custom_call.1} parent=1 // pred_region
      %11 = vsyncadd [#allocation3], 0
      %s12 = sshll.u32 %s0, 4
      %s13 = int_to_ptr.hbm [resolvable:$true] %s12
      %s14 = sshll.u32 [#allocation2], 4
      %s15 = int_to_ptr.vmem [resolvable:$true] %s14
      %20 = dma.hbm_to_vmem [thread:$0]  %s13, 2048, %s15, [#allocation3], 128, 128, 8
    $region5: #{tpu_custom_call.1} parent=1 // pred_fallthru
      _
    // Predicated region
    $region6: #{tpu_custom_call.1} parent=1 // pred_check
      _
    $region7: #{tpu_custom_call.1} parent=1 // pred_check_branch
      %22 = sbr.rel (0) target = $region9
    $region8: #{tpu_custom_call.1} parent=1 // pred_region
      %24 = dma.done [#allocation3], 2048
    $region9: #{tpu_custom_call.1} parent=1 // pred_fallthru
      _
    %v25 = vlaneseq
    %v26 = vshrl.u32 %v25, 7
    %v27 = vadd.s32 %v26, 8
    %v28 = vlaneseq
    %v29 = vand.u32 %v28, 127
    %vm30 = vcmp.eq.s32.totalorder %v26, 0
    %vm31 = vcmp.eq.s32.totalorder %v27, 0
    %vm32 = vcmp.eq.s32.totalorder %v26, 15
    %vm33 = vcmp.eq.s32.totalorder %v27, 15
    %vm34 = vcmp.eq.s32.totalorder %v29, 0
    %vm35 = vcmp.eq.s32.totalorder %v29, 15
    %v36 = vld [vmem:[#allocation2] sm:$0xff]
    %v37 = vld [vmem:[#allocation2 + $0x8] sm:$0xff]
    %s38 = scalar_lea.vmem [#allocation2], 16
    %v39 = vld [vmem:[%s38] sm:$0xff]
    %v40 = vld [vmem:[%s38 + $0x8] sm:$0xff]
    %v41 = vadd.f32 %v36, %v39
    %v42 = vadd.f32 %v37, %v40
    %s43 = scalar_lea.vmem [#allocation2], 32
    %v44 = vld [vmem:[%s43] sm:$0xff]
    %v45 = vld [vmem:[%s43 + $0x8] sm:$0xff]
    %v46 = vadd.f32 %v41, %v44
    %v47 = vadd.f32 %v42, %v45
    %s48 = scalar_lea.vmem [#allocation2], 48
    %v49 = vld [vmem:[%s48] sm:$0xff]
    %v50 = vld [vmem:[%s48 + $0x8] sm:$0xff]
    %v51 = vadd.f32 %v46, %v49
    %v52 = vadd.f32 %v47, %v50
    %v53 = vrot.slane %v51, 7
    %v54 = vrot.slane %v52, 7
    %vm55 = vcmp.lt.s32.totalorder %v26, 1
    %v56 = vsel %vm55, %v53, %v54
    %v57 = vsel %vm55, %v54, %v53
    %v58 = vrot.slane %v51, 1
    %v59 = vrot.slane %v52, 1
    %vm60 = vcmp.lt.s32.totalorder %v26, 7
    %v61 = vsel %vm60, %v58, %v59
    %v62 = vsel %vm60, %v59, %v58
    %v63 = vsel %vm30, %v61, %v57
    %v64 = vsel %vm31, %v62, %v56
    %v65 = vsel %vm32, %v57, %v61
    %v66 = vsel %vm33, %v56, %v62
    %v67 = vmul.f32 %v63, 0.27406862
    %v68 = vmul.f32 %v64, 0.27406862
    %v69 = vmul.f32 %v51, 0.45186275
    %v70 = vmul.f32 %v52, 0.45186275
    %v71 = vadd.f32 %v67, %v69
    %v72 = vadd.f32 %v68, %v70
    %v73 = vmul.f32 %v65, 0.27406862
    %v74 = vmul.f32 %v66, 0.27406862
    %v75 = vadd.f32 %v71, %v73
    %v76 = vadd.f32 %v72, %v74
    %vm77 = vcmask 1047680
    %78 = vrot.lane.b32.xlu0 %v75, 16
    %v79 = vpop.permute.xlu0 %78
    %v80 = vsel %vm77, %v79, %v75
    %81 = vrot.lane.b32.xlu0 %v76, 16
    %v82 = vpop.permute.xlu0 %81
    %v83 = vsel %vm77, %v82, %v76
    %84 = vrot.lane.b32.xlu0 %v80, 16
    %v85 = vpop.permute.xlu0 %84
    %86 = vrot.lane.b32.xlu0 %v83, 16
    %v87 = vpop.permute.xlu0 %86
    %v88 = vsel %vm77, %v85, %v75
    %v89 = vsel %vm77, %v87, %v76
    %92 = vrot.lane.b32.xlu0 %v88, 127
    %v93 = vpop.permute.xlu0 %92
    %94 = vrot.lane.b32.xlu0 %v89, 127
    %v95 = vpop.permute.xlu0 %94
    %98 = vrot.lane.b32.xlu0 %v88, 113
    %v99 = vpop.permute.xlu0 %98
    %100 = vrot.lane.b32.xlu0 %v89, 113
    %v101 = vpop.permute.xlu0 %100
    %v104 = vsel %vm34, %v93, %v99
    %v105 = vsel %vm34, %v95, %v101
    %v106 = vsel %vm35, %v99, %v93
    %v107 = vsel %vm35, %v101, %v95
    %v108 = vmul.f32 %v104, 0.27406862
    %v109 = vmul.f32 %v105, 0.27406862
    %v110 = vmul.f32 %v75, 0.45186275
    %v111 = vmul.f32 %v76, 0.45186275
    %v112 = vadd.f32 %v108, %v110
    %v113 = vadd.f32 %v109, %v111
    %v114 = vmul.f32 %v106, 0.27406862
    %v115 = vmul.f32 %v107, 0.27406862
    %v116 = vadd.f32 %v112, %v114
    %v117 = vadd.f32 %v113, %v115
    %vm118 = vcmask 130048
    %119 = vst.msk [vmem:[#allocation5] sm:$0xff] %vm118, %v116
    %120 = vst.msk [vmem:[#allocation5 + $0x8] sm:$0xff] %vm118, %v117
    %s121 = scalar_lea.vmem [#allocation5], 16
    %122 = vst.msk [vmem:[%s121] sm:$0xff] %vm118, %v116
    %123 = vst.msk [vmem:[%s121 + $0x8] sm:$0xff] %vm118, %v117
    %s124 = scalar_lea.vmem [#allocation5], 32
    %125 = vst.msk [vmem:[%s124] sm:$0xff] %vm118, %v116
    %126 = vst.msk [vmem:[%s124 + $0x8] sm:$0xff] %vm118, %v117
    %s127 = scalar_lea.vmem [#allocation5], 48
    %128 = vst.msk [vmem:[%s127] sm:$0xff] %vm118, %v116
    %129 = vst.msk [vmem:[%s127 + $0x8] sm:$0xff] %vm118, %v117
    %s130 = scalar_lea.vmem [#allocation2], 64
    %v131 = vld [vmem:[%s130] sm:$0xff]
    %v132 = vld [vmem:[%s130 + $0x8] sm:$0xff]
    %s133 = scalar_lea.vmem [#allocation2], 80
    %v134 = vld [vmem:[%s133] sm:$0xff]
    %v135 = vld [vmem:[%s133 + $0x8] sm:$0xff]
    %v136 = vadd.f32 %v131, %v134
    %v137 = vadd.f32 %v132, %v135
    %s138 = scalar_lea.vmem [#allocation2], 96
    %v139 = vld [vmem:[%s138] sm:$0xff]
    %v140 = vld [vmem:[%s138 + $0x8] sm:$0xff]
    %v141 = vadd.f32 %v136, %v139
    %v142 = vadd.f32 %v137, %v140
    %s143 = scalar_lea.vmem [#allocation2], 112
    %v144 = vld [vmem:[%s143] sm:$0xff]
    %v145 = vld [vmem:[%s143 + $0x8] sm:$0xff]
    %v146 = vadd.f32 %v141, %v144
    %v147 = vadd.f32 %v142, %v145
    %v148 = vrot.slane %v146, 7
    %v149 = vrot.slane %v147, 7
    %v150 = vsel %vm55, %v148, %v149
    %v151 = vsel %vm55, %v149, %v148
    %v152 = vrot.slane %v146, 1
    %v153 = vrot.slane %v147, 1
    %v154 = vsel %vm60, %v152, %v153
    %v155 = vsel %vm60, %v153, %v152
    %v156 = vsel %vm30, %v154, %v151
    %v157 = vsel %vm31, %v155, %v150
    %v158 = vsel %vm32, %v151, %v154
    %v159 = vsel %vm33, %v150, %v155
    %v160 = vmul.f32 %v156, 0.27406862
    %v161 = vmul.f32 %v157, 0.27406862
    %v162 = vmul.f32 %v146, 0.45186275
    %v163 = vmul.f32 %v147, 0.45186275
    %v164 = vadd.f32 %v160, %v162
    %v165 = vadd.f32 %v161, %v163
    %v166 = vmul.f32 %v158, 0.27406862
    %v167 = vmul.f32 %v159, 0.27406862
    %v168 = vadd.f32 %v164, %v166
    %v169 = vadd.f32 %v165, %v167
    %170 = vrot.lane.b32.xlu0 %v168, 16
    %v171 = vpop.permute.xlu0 %170
    %v172 = vsel %vm77, %v171, %v168
    %173 = vrot.lane.b32.xlu0 %v169, 16
    %v174 = vpop.permute.xlu0 %173
    %v175 = vsel %vm77, %v174, %v169
    %176 = vrot.lane.b32.xlu0 %v172, 16
    %v177 = vpop.permute.xlu0 %176
    %178 = vrot.lane.b32.xlu0 %v175, 16
    %v179 = vpop.permute.xlu0 %178
    %v180 = vsel %vm77, %v177, %v168
    %v181 = vsel %vm77, %v179, %v169
    %184 = vrot.lane.b32.xlu0 %v180, 127
    %v185 = vpop.permute.xlu0 %184
    %186 = vrot.lane.b32.xlu0 %v181, 127
    %v187 = vpop.permute.xlu0 %186
    %190 = vrot.lane.b32.xlu0 %v180, 113
    %v191 = vpop.permute.xlu0 %190
    %192 = vrot.lane.b32.xlu0 %v181, 113
    %v193 = vpop.permute.xlu0 %192
    %v196 = vsel %vm34, %v185, %v191
    %v197 = vsel %vm34, %v187, %v193
    %v198 = vsel %vm35, %v191, %v185
    %v199 = vsel %vm35, %v193, %v187
    %v200 = vmul.f32 %v196, 0.27406862
    %v201 = vmul.f32 %v197, 0.27406862
    %v202 = vmul.f32 %v168, 0.45186275
    %v203 = vmul.f32 %v169, 0.45186275
    %v204 = vadd.f32 %v200, %v202
    %v205 = vadd.f32 %v201, %v203
    %v206 = vmul.f32 %v198, 0.27406862
    %v207 = vmul.f32 %v199, 0.27406862
    %v208 = vadd.f32 %v204, %v206
    %v209 = vadd.f32 %v205, %v207
    %s210 = scalar_lea.vmem [#allocation5], 64
    %211 = vst.msk [vmem:[%s210] sm:$0xff] %vm118, %v208
    %212 = vst.msk [vmem:[%s210 + $0x8] sm:$0xff] %vm118, %v209
    %s213 = scalar_lea.vmem [#allocation5], 80
    %214 = vst.msk [vmem:[%s213] sm:$0xff] %vm118, %v208
    %215 = vst.msk [vmem:[%s213 + $0x8] sm:$0xff] %vm118, %v209
    %s216 = scalar_lea.vmem [#allocation5], 96
    %217 = vst.msk [vmem:[%s216] sm:$0xff] %vm118, %v208
    %218 = vst.msk [vmem:[%s216 + $0x8] sm:$0xff] %vm118, %v209
    %s219 = scalar_lea.vmem [#allocation5], 112
    %220 = vst.msk [vmem:[%s219] sm:$0xff] %vm118, %v208
    %221 = vst.msk [vmem:[%s219 + $0x8] sm:$0xff] %vm118, %v209
    // Predicated region
    $region10: #{tpu_custom_call.1} parent=1 // pred_check
      _
    $region11: #{tpu_custom_call.1} parent=1 // pred_check_branch
      %223 = sbr.rel (0) target = $region13
    $region12: #{tpu_custom_call.1} parent=1 // pred_region
      %225 = vsyncadd [#allocation4], 0
      %s226 = sshll.u32 [#allocation5], 4
      %s227 = int_to_ptr.vmem [resolvable:$true] %s226
      %s228 = sshll.u32 %s1, 4
      %s229 = int_to_ptr.hbm [resolvable:$true] %s228
      %234 = dma.vmem_to_hbm [thread:$0]  %s227, 2048, %s229, [#allocation4], 128, 128, 8
    $region13: #{tpu_custom_call.1} parent=1 // pred_fallthru
      _
    // Predicated region
    $region14: #{tpu_custom_call.1} parent=1 // pred_check
      _
    $region15: #{tpu_custom_call.1} parent=1 // pred_check_branch
      %236 = sbr.rel (0) target = $region17
    $region16: #{tpu_custom_call.1} parent=1 // pred_region
      %238 = dma.done [#allocation4], 2048
    $region17: #{tpu_custom_call.1} parent=1 // pred_fallthru
      _
    %239 = vsyncpa [#allocation3], 1
    %240 = vsyncpa [#allocation4], 1

</llo_original>
